<compile_context>
chip_gen: v7x
topology: tpu7x:2x2x1
jax: 0.10.0
libtpu: 0.0.40
codegen_flags: <defaults>
</compile_context>

<pallas_src>
import functools

import jax
import jax.numpy as jnp
from jax.experimental import pallas as pl
from jax.experimental.pallas import tpu as pltpu


HEAD_PAD = 128  # fused actor+critic weight padded to one lane-dense vreg width


# ---------------------------------------------------------------------------
# Kernel: 2 tanh MLP layers + fused (actor||critic) head -> narrow outputs
# ---------------------------------------------------------------------------
def policy_kernel(x_ref, w1_ref, b1_ref, w2_ref, b2_ref, wh_ref, bh_ref,
                  logits_ref, value_ref, *, out_dim, bf16_tanh):
    mxu = w1_ref.dtype                                     # bf16 (or f32)

    def act(z_f32):
        if bf16_tanh and mxu == jnp.bfloat16:
            return jnp.tanh(z_f32.astype(mxu))             # bf16 EUP on v6e/v7x
        return jnp.tanh(z_f32).astype(mxu)                 # f32 tanh (v5e path)

    x = x_ref[...].astype(mxu)                             # (TB, in)
    h1 = act(jnp.dot(x, w1_ref[...],
                     preferred_element_type=jnp.float32) + b1_ref[...])
    h2 = act(jnp.dot(h1, w2_ref[...],
                     preferred_element_type=jnp.float32) + b2_ref[...])
    head = jnp.dot(h2, wh_ref[...],
                   preferred_element_type=jnp.float32) + bh_ref[...]   # (TB, 128)

    # Narrow stores: logits occupy lanes [0, out_dim); critic column out_dim is
    # pulled to lane 0 via a masked lane-sum (exact: all other lanes contribute 0).
    logits_ref[...] = head[:, :out_dim]
    lane = jax.lax.broadcasted_iota(jnp.int32, head.shape, 1)
    value_ref[...] = jnp.sum(jnp.where(lane == out_dim, head, 0.0),
                             axis=1, keepdims=True)


# ---------------------------------------------------------------------------
# Wrapper
# ---------------------------------------------------------------------------
def _cdiv(a, b):
    return -(-a // b)


def _round_up(n, m):
    return _cdiv(n, m) * m


def _spec(block_shape, index_map):
    return pl.BlockSpec(block_shape, index_map,
                        memory_space=pltpu.MemorySpace.VMEM)


def _choose_tiling(B, max_batch_tile):
    """Balanced batch tiles (padding < 8 rows/tile); >=2 grid steps when B >= 16
    so the "parallel" axis can shard across v7x's two TensorCores."""
    n_tiles = _cdiv(B, max_batch_tile)
    if B >= 16:
        n_tiles = max(n_tiles, 2)
    tb = _round_up(_cdiv(B, n_tiles), 8)
    return tb, n_tiles * tb, n_tiles


def prepare_params(params, *, use_bf16=True):
    """Hoisted per-parameter-update prep (NOT per forward call): fuse actor+critic
    heads into one lane-dense (H, 128) weight and cast matmul operands to the MXU
    dtype.  Returns (w1m, b1, w2m, b2, whm, bh, out_dim)."""
    w1, b1, w2, b2, wa, ba, wc, bc = params
    hidden_dim = w1.shape[1]
    out_dim = wa.shape[1]
    assert out_dim + 1 <= HEAD_PAD
    wh = jnp.zeros((hidden_dim, HEAD_PAD), jnp.float32)
    wh = wh.at[:, :out_dim].set(wa).at[:, out_dim:out_dim + 1].set(wc)
    bh = jnp.zeros((1, HEAD_PAD), jnp.float32)
    bh = bh.at[:, :out_dim].set(ba).at[:, out_dim:out_dim + 1].set(bc)
    md = jnp.bfloat16 if use_bf16 else jnp.float32
    return (w1.astype(md), b1, w2.astype(md), b2, wh.astype(md), bh, out_dim)


def policy_forward(x, prepared, *, max_batch_tile=256, bf16_tanh=True):
    """x: (B, input_dim) f32 -> (action_logits (B, out_dim), value (B, 1))."""
    w1m, b1, w2m, b2, whm, bh, out_dim = prepared
    B, input_dim = x.shape
    hidden_dim = w1m.shape[1]

    tb, b_pad, n_tiles = _choose_tiling(B, max_batch_tile)
    if b_pad != B:
        x = jnp.pad(x, ((0, b_pad - B), (0, 0)))

    wbytes = w1m.dtype.itemsize
    cost = pl.CostEstimate(
        flops=2 * b_pad * (input_dim * hidden_dim
                           + hidden_dim * hidden_dim
                           + hidden_dim * HEAD_PAD),
        transcendentals=2 * b_pad * hidden_dim,
        bytes_accessed=(b_pad * input_dim * 4
                        + (w1m.size + w2m.size + whm.size) * wbytes
                        + (b1.size + b2.size + bh.size) * 4
                        + b_pad * (out_dim + 1) * 4),
    )

    kernel = functools.partial(policy_kernel, out_dim=out_dim,
                               bf16_tanh=bf16_tanh)

    logits, value = pl.pallas_call(
        kernel,
        out_shape=(jax.ShapeDtypeStruct((b_pad, out_dim), jnp.float32),
                   jax.ShapeDtypeStruct((b_pad, 1), jnp.float32)),
        grid=(n_tiles,),
        in_specs=[
            _spec((tb, input_dim), lambda i: (i, 0)),   # x: batch-tiled
            _spec(w1m.shape, lambda i: (0, 0)),         # weights/biases: resident
            _spec(b1.shape, lambda i: (0, 0)),
            _spec(w2m.shape, lambda i: (0, 0)),
            _spec(b2.shape, lambda i: (0, 0)),
            _spec(whm.shape, lambda i: (0, 0)),
            _spec(bh.shape, lambda i: (0, 0)),
        ],
        out_specs=(_spec((tb, out_dim), lambda i: (i, 0)),
                   _spec((tb, 1), lambda i: (i, 0))),
        compiler_params=pltpu.CompilerParams(
            dimension_semantics=("parallel",)),
        cost_estimate=cost,
    )(x, w1m, b1, w2m, b2, whm, bh)

    if b_pad != B:
        logits, value = logits[:B], value[:B]
    return logits, value


# ---------------------------------------------------------------------------
# Deterministic parameter init (orthogonal with gain sqrt(2), zero bias),
# matching the shapes/init of the PyTorch module's __init__.
# ---------------------------------------------------------------------------
def orthogonal_init(key, out_dim, in_dim, gain):
    rows, cols = out_dim, in_dim
    a = jax.random.normal(key, (max(rows, cols), min(rows, cols)), jnp.float32)
    q, r = jnp.linalg.qr(a)
    q = q * jnp.sign(jnp.diagonal(r))[None, :]
    if rows < cols:
        q = q.T
    w = gain * q[:rows, :cols]                  # (out, in), PyTorch convention
    return w.T.astype(jnp.float32)              # return (in, out) for the kernel


def init_params(key, input_dim=8, hidden_dim=256, output_dim=4):
    gain = float(jnp.sqrt(2.0))
    k1, k2, k3, k4 = jax.random.split(key, 4)
    w1 = orthogonal_init(k1, hidden_dim, input_dim, gain)     # (in, H)
    b1 = jnp.zeros((1, hidden_dim), jnp.float32)
    w2 = orthogonal_init(k2, hidden_dim, hidden_dim, gain)    # (H, H)
    b2 = jnp.zeros((1, hidden_dim), jnp.float32)
    wa = orthogonal_init(k3, output_dim, hidden_dim, gain)    # (H, out)
    ba = jnp.zeros((1, output_dim), jnp.float32)
    wc = orthogonal_init(k4, 1, hidden_dim, gain)             # (H, 1)
    bc = jnp.zeros((1, 1), jnp.float32)
    return (w1, b1, w2, b2, wa, ba, wc, bc)


def reference_forward(x, params, *, use_bf16=True, bf16_tanh=True):
    """Pure-JAX reference mirroring the kernel's dtype choices."""
    w1, b1, w2, b2, wa, ba, wc, bc = params
    md = jnp.bfloat16 if use_bf16 else jnp.float32

    def act(z_f32):
        if use_bf16 and bf16_tanh:
            return jnp.tanh(z_f32.astype(md))
        return jnp.tanh(z_f32).astype(md)

    h1 = act(jnp.dot(x.astype(md), w1.astype(md),
                     preferred_element_type=jnp.float32) + b1)
    h2 = act(jnp.dot(h1, w2.astype(md),
                     preferred_element_type=jnp.float32) + b2)
    logits = jnp.dot(h2, wa.astype(md),
                     preferred_element_type=jnp.float32) + ba
    value = jnp.dot(h2, wc.astype(md),
                    preferred_element_type=jnp.float32) + bc
    return logits, value


if __name__ == "__main__":
    key = jax.random.PRNGKey(0)
    pkey, xkey = jax.random.split(key)

    input_dim, hidden_dim, output_dim = 8, 256, 4
    batch = 8

    params = init_params(pkey, input_dim, hidden_dim, output_dim)
    x = jax.random.normal(xkey, (batch, input_dim), jnp.float32)

    prepared = prepare_params(params, use_bf16=True)   # once per param update

    logits, value = policy_forward(x, prepared)
    jax.block_until_ready((logits, value))
    assert logits.shape == (batch, output_dim)
    assert value.shape == (batch, 1)

    # Structural check (f32 tanh path) vs a JAX reference with identical math.
    logits_s, value_s = policy_forward(x, prepared, bf16_tanh=False)
    ref_l, ref_v = reference_forward(x, params, use_bf16=True, bf16_tanh=False)
    assert jnp.allclose(logits_s, ref_l, atol=1e-3, rtol=1e-3)
    assert jnp.allclose(value_s, ref_v, atol=1e-3, rtol=1e-3)

    # Default bf16-tanh path vs a reference that mirrors it.
    ref_l, ref_v = reference_forward(x, params, use_bf16=True, bf16_tanh=True)
    assert jnp.allclose(logits, ref_l, atol=5e-2, rtol=5e-2)
    assert jnp.allclose(value, ref_v, atol=5e-2, rtol=5e-2)

    # Loose sanity check vs full-f32 PyTorch-module semantics.
    f32_l, f32_v = reference_forward(x, params, use_bf16=False, bf16_tanh=False)
    assert jnp.allclose(logits, f32_l, atol=1e-1, rtol=1e-1)
    assert jnp.allclose(value, f32_v, atol=1e-1, rtol=1e-1)

    # Multi-tile / padded-batch path (exercises grid=(2,) and the [:B] trim).
    xb = jax.random.normal(xkey, (20, input_dim), jnp.float32)
    lb, vb = policy_forward(xb, prepared)
    jax.block_until_ready((lb, vb))
    assert lb.shape == (20, output_dim) and vb.shape == (20, 1)
    ref_lb, ref_vb = reference_forward(xb, params, use_bf16=True, bf16_tanh=True)
    assert jnp.allclose(lb, ref_lb, atol=5e-2, rtol=5e-2)
    assert jnp.allclose(vb, ref_vb, atol=5e-2, rtol=5e-2)

    print("KERNEL_OK")
</pallas_src>

<mosaic_0001>
module attributes {stable_mosaic.version = 11 : i64} {
  func.func @policy_kernel(%arg0: i32, %arg1: memref<8x8xf32, #tpu.memory_space<vmem>>, %arg2: memref<8x256xbf16, #tpu.memory_space<vmem>>, %arg3: memref<1x256xf32, #tpu.memory_space<vmem>>, %arg4: memref<256x256xbf16, #tpu.memory_space<vmem>>, %arg5: memref<1x256xf32, #tpu.memory_space<vmem>>, %arg6: memref<256x128xbf16, #tpu.memory_space<vmem>>, %arg7: memref<1x128xf32, #tpu.memory_space<vmem>>, %arg8: memref<8x4xf32, #tpu.memory_space<vmem>>, %arg9: memref<8x1xf32, #tpu.memory_space<vmem>>) attributes {dimension_semantics = [#tpu.dimension_semantics<parallel>], iteration_bounds = array<i64: 1>, scalar_prefetch = 0 : i64, scratch_operands = 0 : i64, tpu.core_type = #tpu.core_type<tc>, window_params = [{transform_indices = @transform_0, window_bounds = array<i64: 8, 8>}, {pipeline_mode = #tpu.pipeline_mode<synchronous>, transform_indices = @transform_1, window_bounds = array<i64: 8, 256>}, {pipeline_mode = #tpu.pipeline_mode<synchronous>, transform_indices = @transform_2, window_bounds = array<i64: 1, 256>}, {pipeline_mode = #tpu.pipeline_mode<synchronous>, transform_indices = @transform_3, window_bounds = array<i64: 256, 256>}, {pipeline_mode = #tpu.pipeline_mode<synchronous>, transform_indices = @transform_4, window_bounds = array<i64: 1, 256>}, {pipeline_mode = #tpu.pipeline_mode<synchronous>, transform_indices = @transform_5, window_bounds = array<i64: 256, 128>}, {pipeline_mode = #tpu.pipeline_mode<synchronous>, transform_indices = @transform_6, window_bounds = array<i64: 1, 128>}, {transform_indices = @transform_7, window_bounds = array<i64: 8, 4>}, {transform_indices = @transform_8, window_bounds = array<i64: 8, 1>}]} {
    %c0 = arith.constant 0 : index
    %c0_0 = arith.constant 0 : index
    %0 = vector.load %arg1[%c0, %c0_0] : memref<8x8xf32, #tpu.memory_space<vmem>>, vector<8x8xf32>
    %1 = arith.truncf %0 : vector<8x8xf32> to vector<8x8xbf16>
    %c0_1 = arith.constant 0 : index
    %c0_2 = arith.constant 0 : index
    %2 = vector.load %arg2[%c0_1, %c0_2] : memref<8x256xbf16, #tpu.memory_space<vmem>>, vector<8x256xbf16>
    %cst = arith.constant dense<0.000000e+00> : vector<8x256xf32>
    %3 = tpu.matmul %1, %2, %cst {dimension_numbers = #tpu.dot_dimension_numbers<[1], [0], [0], [1], [0, 0, 1, 1], [], []>} : vector<8x8xbf16>, vector<8x256xbf16>, vector<8x256xf32> -> vector<8x256xf32>
    %c0_3 = arith.constant 0 : index
    %c0_4 = arith.constant 0 : index
    %4 = vector.load %arg3[%c0_3, %c0_4] : memref<1x256xf32, #tpu.memory_space<vmem>>, vector<1x256xf32>
    %5 = vector.broadcast %4 : vector<1x256xf32> to vector<8x256xf32>
    %6 = arith.addf %3, %5 : vector<8x256xf32>
    %7 = arith.truncf %6 : vector<8x256xf32> to vector<8x256xbf16>
    %8 = math.tanh %7 : vector<8x256xbf16>
    %c0_5 = arith.constant 0 : index
    %c0_6 = arith.constant 0 : index
    %9 = vector.load %arg4[%c0_5, %c0_6] : memref<256x256xbf16, #tpu.memory_space<vmem>>, vector<256x256xbf16>
    %cst_7 = arith.constant dense<0.000000e+00> : vector<8x256xf32>
    %10 = tpu.matmul %8, %9, %cst_7 {dimension_numbers = #tpu.dot_dimension_numbers<[1], [0], [0], [1], [0, 0, 1, 1], [], []>} : vector<8x256xbf16>, vector<256x256xbf16>, vector<8x256xf32> -> vector<8x256xf32>
    %c0_8 = arith.constant 0 : index
    %c0_9 = arith.constant 0 : index
    %11 = vector.load %arg5[%c0_8, %c0_9] : memref<1x256xf32, #tpu.memory_space<vmem>>, vector<1x256xf32>
    %12 = vector.broadcast %11 : vector<1x256xf32> to vector<8x256xf32>
    %13 = arith.addf %10, %12 : vector<8x256xf32>
    %14 = arith.truncf %13 : vector<8x256xf32> to vector<8x256xbf16>
    %15 = math.tanh %14 : vector<8x256xbf16>
    %c0_10 = arith.constant 0 : index
    %c0_11 = arith.constant 0 : index
    %16 = vector.load %arg6[%c0_10, %c0_11] : memref<256x128xbf16, #tpu.memory_space<vmem>>, vector<256x128xbf16>
    %cst_12 = arith.constant dense<0.000000e+00> : vector<8x128xf32>
    %17 = tpu.matmul %15, %16, %cst_12 {dimension_numbers = #tpu.dot_dimension_numbers<[1], [0], [0], [1], [0, 0, 1, 1], [], []>} : vector<8x256xbf16>, vector<256x128xbf16>, vector<8x128xf32> -> vector<8x128xf32>
    %c0_13 = arith.constant 0 : index
    %c0_14 = arith.constant 0 : index
    %18 = vector.load %arg7[%c0_13, %c0_14] : memref<1x128xf32, #tpu.memory_space<vmem>>, vector<1x128xf32>
    %19 = vector.broadcast %18 : vector<1x128xf32> to vector<8x128xf32>
    %20 = arith.addf %17, %19 : vector<8x128xf32>
    %21 = vector.extract_strided_slice %20 {offsets = [0, 0], sizes = [8, 4], strides = [1, 1]} : vector<8x128xf32> to vector<8x4xf32>
    %c0_15 = arith.constant 0 : index
    %c0_16 = arith.constant 0 : index
    %22 = vector.load %arg8[%c0_15, %c0_16] : memref<8x4xf32, #tpu.memory_space<vmem>>, vector<8x4xf32>
    tpu.vector_store %arg8[%c0_15, %c0_16], %21 {strides = array<i32>} : memref<8x4xf32, #tpu.memory_space<vmem>>, vector<8x4xf32>,
    %23 = tpu.iota {dimensions = array<i32: 1>} : vector<8x128xi32>
    %c4_i32 = arith.constant 4 : i32
    %24 = vector.broadcast %c4_i32 : i32 to vector<8x128xi32>
    %25 = arith.cmpi eq, %23, %24 : vector<8x128xi32>
    %cst_17 = arith.constant 0.000000e+00 : f32
    %26 = vector.broadcast %cst_17 : f32 to vector<8x128xf32>
    %27 = arith.select %25, %20, %26 : vector<8x128xi1>, vector<8x128xf32>
    %cst_18 = arith.constant dense<0.000000e+00> : vector<8xf32>
    %28 = vector.multi_reduction <add>, %27, %cst_18 [1] : vector<8x128xf32> to vector<8xf32>
    %29 = vector.shape_cast %28 : vector<8xf32> to vector<8x1xf32>
    %c0_19 = arith.constant 0 : index
    %c0_20 = arith.constant 0 : index
    %30 = vector.load %arg9[%c0_19, %c0_20] : memref<8x1xf32, #tpu.memory_space<vmem>>, vector<8x1xf32>
    tpu.vector_store %arg9[%c0_19, %c0_20], %29 {strides = array<i32>} : memref<8x1xf32, #tpu.memory_space<vmem>>, vector<8x1xf32>,
    return
  }
  func.func @transform_0(%arg0: i32) -> (i32, i32) {
    %c0_i32 = arith.constant 0 : i32
    %c0_i32_0 = arith.constant 0 : i32
    return %arg0, %c0_i32 : i32, i32
  }
  func.func @transform_1(%arg0: i32) -> (i32, i32) {
    %c0_i32 = arith.constant 0 : i32
    %c0_i32_0 = arith.constant 0 : i32
    %c0_i32_1 = arith.constant 0 : i32
    return %c0_i32, %c0_i32_0 : i32, i32
  }
  func.func @transform_2(%arg0: i32) -> (i32, i32) {
    %c0_i32 = arith.constant 0 : i32
    %c0_i32_0 = arith.constant 0 : i32
    %c0_i32_1 = arith.constant 0 : i32
    return %c0_i32, %c0_i32_0 : i32, i32
  }
  func.func @transform_3(%arg0: i32) -> (i32, i32) {
    %c0_i32 = arith.constant 0 : i32
    %c0_i32_0 = arith.constant 0 : i32
    %c0_i32_1 = arith.constant 0 : i32
    return %c0_i32, %c0_i32_0 : i32, i32
  }
  func.func @transform_4(%arg0: i32) -> (i32, i32) {
    %c0_i32 = arith.constant 0 : i32
    %c0_i32_0 = arith.constant 0 : i32
    %c0_i32_1 = arith.constant 0 : i32
    return %c0_i32, %c0_i32_0 : i32, i32
  }
  func.func @transform_5(%arg0: i32) -> (i32, i32) {
    %c0_i32 = arith.constant 0 : i32
    %c0_i32_0 = arith.constant 0 : i32
    %c0_i32_1 = arith.constant 0 : i32
    return %c0_i32, %c0_i32_0 : i32, i32
  }
  func.func @transform_6(%arg0: i32) -> (i32, i32) {
    %c0_i32 = arith.constant 0 : i32
    %c0_i32_0 = arith.constant 0 : i32
    %c0_i32_1 = arith.constant 0 : i32
    return %c0_i32, %c0_i32_0 : i32, i32
  }
  func.func @transform_7(%arg0: i32) -> (i32, i32) {
    %c0_i32 = arith.constant 0 : i32
    %c0_i32_0 = arith.constant 0 : i32
    return %arg0, %c0_i32 : i32, i32
  }
  func.func @transform_8(%arg0: i32) -> (i32, i32) {
    %c0_i32 = arith.constant 0 : i32
    %c0_i32_0 = arith.constant 0 : i32
    return %arg0, %c0_i32 : i32, i32
  }
}

</mosaic_0001>

<llo_original>
// kernel: tpu_custom_call.1
$region0: #{tpu_custom_call.1}
  #allocation0 [shape = 'u32[]', space=smem, size = 0x4, offset = 0x4, fixed_abs, tag = 'smem constant byte address 0x4 - core index']
  #allocation1 [shape = 'u32[144,128]{1,0:T(1,128)}', space=vmem, size = 0x12000, scoped, tag = 'internal scratch']
  %s0 = inlined_call_operand.hbm [shape: f32[8,8], index: 0, kind: input, shape index: {}]
  %s1 = inlined_call_operand.hbm [shape: bf16[8,256], index: 1, kind: input, shape index: {}]
  %s2 = inlined_call_operand.vmem [shape: f32[1,256], index: 2, kind: input, shape index: {}]
  %s3 = inlined_call_operand.hbm [shape: bf16[256,256], index: 3, kind: input, shape index: {}]
  %s4 = inlined_call_operand.vmem [shape: f32[1,256], index: 4, kind: input, shape index: {}]
  %s5 = inlined_call_operand.hbm [shape: bf16[256,128], index: 5, kind: input, shape index: {}]
  %s6 = inlined_call_operand.vmem [shape: f32[1,128], index: 6, kind: input, shape index: {}]
  %s7 = inlined_call_operand.vmem [shape: f32[8,4], index: 7, kind: output, shape index: {0}]
  %s8 = inlined_call_operand.vmem [shape: f32[8,1], index: 8, kind: output, shape index: {1}]
  %9 = xla_tuple %s7, %s8
  %s10 = sld [smem:[#allocation0]]
  $region62: #{tpu_custom_call.1} parent=0
    _
  %s12 = ssub.s32 1, %s10
  %s13 = scalar_select 0, %s12, %s10
  $region1: #{tpu_custom_call.1} parent=0
    #allocation2 [shape = 'u8[4096]{0}', space=vmem, size = 0x1000, scoped, tag = 'input window, operand 0, single buffered']
    #allocation3 [shape = 's32[1]{0}', space=sflag, size = 0x4, scoped, tag = 'scoped memory for tpu_custom_call.1']
    #allocation4 [shape = 'u8[4096]{0}', space=vmem, size = 0x1000, scoped, tag = 'input window, operand 1, single buffered']
    #allocation5 [shape = 's32[1]{0}', space=sflag, size = 0x4, scoped, tag = 'scoped memory for tpu_custom_call.1']
    #allocation6 [shape = 'u8[131072]{0}', space=vmem, size = 0x20000, scoped, tag = 'input window, operand 3, single buffered']
    #allocation7 [shape = 'u8[65536]{0}', space=vmem, size = 0x10000, scoped, tag = 'input window, operand 5, single buffered']
    #allocation8 [shape = 's32[1]{0}', space=sflag, size = 0x4, scoped, tag = 'scoped memory for tpu_custom_call.1']
    %14 = vsyncpa [#allocation3], 0
    %15 = vsyncpa [#allocation5], 0
    %16 = vsyncpa [#allocation8], 0
    // Predicated region
    $region2: #{tpu_custom_call.1} parent=1 // pred_check
      _
    $region3: #{tpu_custom_call.1} parent=1 // pred_check_branch
      %18 = sbr.rel (0) target = $region5
    $region4: #{tpu_custom_call.1} parent=1 // pred_region
      %s20 = ssub.s32 128, 128
      %21 = vsyncadd [#allocation3], %s20
      %s23 = sshll.u32 [#allocation2], 4
      %s24 = int_to_ptr.vmem [resolvable:$true] %s23
      %26 = dma.hbm_to_vmem [thread:$0]  %s0, 128, %s24, [#allocation3]
    $region5: #{tpu_custom_call.1} parent=1 // pred_fallthru
      _
    // Predicated region
    $region6: #{tpu_custom_call.1} parent=1 // pred_check
      _
    $region7: #{tpu_custom_call.1} parent=1 // pred_check_branch
      %28 = sbr.rel (0) target = $region9
    $region8: #{tpu_custom_call.1} parent=1 // pred_region
      %s30 = ssub.s32 128, 128
      %31 = vsyncadd [#allocation5], %s30
      %s33 = sshll.u32 [#allocation4], 4
      %s34 = int_to_ptr.vmem [resolvable:$true] %s33
      %36 = dma.hbm_to_vmem [thread:$0]  %s1, 128, %s34, [#allocation5]
    $region9: #{tpu_custom_call.1} parent=1 // pred_fallthru
      _
    // Predicated region
    $region10: #{tpu_custom_call.1} parent=1 // pred_check
      _
    $region11: #{tpu_custom_call.1} parent=1 // pred_check_branch
      %38 = sbr.rel (0) target = $region13
    $region12: #{tpu_custom_call.1} parent=1 // pred_region
      _
    $region13: #{tpu_custom_call.1} parent=1 // pred_fallthru
      _
    // Predicated region
    $region14: #{tpu_custom_call.1} parent=1 // pred_check
      _
    $region15: #{tpu_custom_call.1} parent=1 // pred_check_branch
      %40 = sbr.rel (0) target = $region17
    $region16: #{tpu_custom_call.1} parent=1 // pred_region
      %s42 = ssub.s32 4096, 4096
      %43 = vsyncadd [#allocation5], %s42
      %s44 = sshll.u32 [#allocation6], 4
      %s45 = int_to_ptr.vmem [resolvable:$true] %s44
      %50 = dma.hbm_to_vmem [thread:$0]  %s3, 4096, %s45, [#allocation5], 128, 128, 8
    $region17: #{tpu_custom_call.1} parent=1 // pred_fallthru
      _
    // Predicated region
    $region18: #{tpu_custom_call.1} parent=1 // pred_check
      _
    $region19: #{tpu_custom_call.1} parent=1 // pred_check_branch
      %52 = sbr.rel (0) target = $region21
    $region20: #{tpu_custom_call.1} parent=1 // pred_region
      _
    $region21: #{tpu_custom_call.1} parent=1 // pred_fallthru
      _
    // Predicated region
    $region22: #{tpu_custom_call.1} parent=1 // pred_check
      _
    $region23: #{tpu_custom_call.1} parent=1 // pred_check_branch
      %54 = sbr.rel (0) target = $region25
    $region24: #{tpu_custom_call.1} parent=1 // pred_region
      %s56 = ssub.s32 2048, 2048
      %57 = vsyncadd [#allocation8], %s56
      %s58 = sshll.u32 [#allocation7], 4
      %s59 = int_to_ptr.vmem [resolvable:$true] %s58
      %64 = dma.hbm_to_vmem [thread:$0]  %s5, 2048, %s59, [#allocation8], 64, 64, 4
    $region25: #{tpu_custom_call.1} parent=1 // pred_fallthru
      _
    // Predicated region
    $region26: #{tpu_custom_call.1} parent=1 // pred_check
      _
    $region27: #{tpu_custom_call.1} parent=1 // pred_check_branch
      %66 = sbr.rel (0) target = $region29
    $region28: #{tpu_custom_call.1} parent=1 // pred_region
      _
    $region29: #{tpu_custom_call.1} parent=1 // pred_fallthru
      _
    // Predicated region
    $region30: #{tpu_custom_call.1} parent=1 // pred_check
      _
    $region31: #{tpu_custom_call.1} parent=1 // pred_check_branch
      %68 = sbr.rel (0) target = $region33
    $region32: #{tpu_custom_call.1} parent=1 // pred_region
      %69 = dma.done [#allocation3], 128
    $region33: #{tpu_custom_call.1} parent=1 // pred_fallthru
      _
    // Predicated region
    $region34: #{tpu_custom_call.1} parent=1 // pred_check
      _
    $region35: #{tpu_custom_call.1} parent=1 // pred_check_branch
      %71 = sbr.rel (0) target = $region37
    $region36: #{tpu_custom_call.1} parent=1 // pred_region
      %72 = dma.done [#allocation5], 128
    $region37: #{tpu_custom_call.1} parent=1 // pred_fallthru
      _
    // Predicated region
    $region38: #{tpu_custom_call.1} parent=1 // pred_check
      _
    $region39: #{tpu_custom_call.1} parent=1 // pred_check_branch
      %74 = sbr.rel (0) target = $region41
    $region40: #{tpu_custom_call.1} parent=1 // pred_region
      %75 = dma.done [#allocation5], 4096
    $region41: #{tpu_custom_call.1} parent=1 // pred_fallthru
      _
    // Predicated region
    $region42: #{tpu_custom_call.1} parent=1 // pred_check
      _
    $region43: #{tpu_custom_call.1} parent=1 // pred_check_branch
      %77 = sbr.rel (0) target = $region45
    $region44: #{tpu_custom_call.1} parent=1 // pred_region
      %78 = dma.done [#allocation8], 2048
    $region45: #{tpu_custom_call.1} parent=1 // pred_fallthru
      _
    %v80 = vld [vmem:[#allocation2] sm:$0xff]
    %v81 = vpack.c.bf16 %v80, %v80
    %v82 = vld [vmem:[#allocation4] sm:$0xff]
    %v83 = vld [vmem:[%s2] sm:$0x3]
    %v85 = vlaneseq
    %v86 = vshrl.u32 %v85, 7
    %v87 = vsub.s32 0, %v86
    %v88 = vrot.slane %v83, %v87
    %v89 = vlaneseq
    %v90 = vshrl.u32 %v89, 7
    %v91 = vsub.s32 1, %v90
    %v92 = vrot.slane %v83, %v91
    %v96 = vunpack.c.l.b16 %v82
    %v97 = vunpack.c.h.b16 %v82
    %v98 = vpack.c.b16 %v96, %v96
    %v99 = vpack.c.b16 %v97, %v97
    %vm100 = vcmask 64512
    %v102 = vsel %vm100, %v81, 0
    %vm104 = vcmask 1043456
    %v106 = vsel %vm104, %v98, 0
    %v109 = vsel %vm104, %v99, 0
    %111 = vmatprep.subr.bf16.mxu0 %v109
    %112 = vmatpush1.bf16.msra.mxu0 %v106
    %113 = vmatprep.subr.bf16.mxu0 0
    %114 = vmatpush1.bf16.msra.mxu0 0
    %115 = vmatprep.subr.bf16.mxu0 0
    %116 = vmatpush1.bf16.msra.mxu0 0
    %117 = vmatprep.subr.bf16.mxu0 0
    %118 = vmatpush1.bf16.msra.mxu0 0
    %119 = vmatprep.subr.bf16.mxu0 0
    %120 = vmatpush1.bf16.msra.mxu0 0
    %121 = vmatprep.subr.bf16.mxu0 0
    %122 = vmatpush1.bf16.msra.mxu0 0
    %123 = vmatprep.subr.bf16.mxu0 0
    %124 = vmatpush1.bf16.msra.mxu0 0
    %125 = vmatprep.subr.bf16.mxu0 0
    %126 = vmatpush1.bf16.msra.mxu0 0
    %127 = vmatprep.subr.bf16.mxu0 0
    %128 = vmatpush1.bf16.msra.mxu0 0
    %129 = vmatprep.subr.bf16.mxu0 0
    %130 = vmatpush1.bf16.msra.mxu0 0
    %131 = vmatprep.subr.bf16.mxu0 0
    %132 = vmatpush1.bf16.msra.mxu0 0
    %133 = vmatprep.subr.bf16.mxu0 0
    %134 = vmatpush1.bf16.msra.mxu0 0
    %135 = vmatprep.subr.bf16.mxu0 0
    %136 = vmatpush1.bf16.msra.mxu0 0
    %137 = vmatprep.subr.bf16.mxu0 0
    %138 = vmatpush1.bf16.msra.mxu0 0
    %139 = vmatprep.subr.bf16.mxu0 0
    %140 = vmatpush1.bf16.msra.mxu0 0
    %141 = vmatprep.subr.bf16.mxu0 0
    %142 = vmatpush1.bf16.msra.mxu0 0
    %143 = vmatprep.mubr.bf16.mxu0 0
    %144 = vmatmul.mubr.bf16.gmra.mrb[0].mxu0 %v102
    %v145 = vpop.f32.mrb[0].mxu0
    %v146 = vadd.f32 %v88, %v145
    %v147 = vpop.f32.mrb[0].mxu0
    %v148 = vadd.f32 %v92, %v147
    %v149 = vpop.f32.mrb[0].mxu0
    %v150 = vpop.f32.mrb[0].mxu0
    %151 = vdwg.mxu0
    %v152 = vpack.c.bf16 %v146, %v146
    %v153 = vpack.c.bf16 %v148, %v148
    %v154 = vtanh.bf16.pop %v152
    %v155 = vtanh.bf16.pop %v153
    %v156 = vld [vmem:[#allocation6] sm:$0xff]
    %v157 = vld [vmem:[#allocation6 + $0x8] sm:$0xff]
    %v158 = vld [vmem:[#allocation6 + $0x10] sm:$0xff]
    %v159 = vld [vmem:[#allocation6 + $0x18] sm:$0xff]
    %v160 = vld [vmem:[#allocation6 + $0x20] sm:$0xff]
    %v161 = vld [vmem:[#allocation6 + $0x28] sm:$0xff]
    %v162 = vld [vmem:[#allocation6 + $0x30] sm:$0xff]
    %v163 = vld [vmem:[#allocation6 + $0x38] sm:$0xff]
    %v164 = vld [vmem:[#allocation6 + $0x40] sm:$0xff]
    %v165 = vld [vmem:[#allocation6 + $0x48] sm:$0xff]
    %v166 = vld [vmem:[#allocation6 + $0x50] sm:$0xff]
    %v167 = vld [vmem:[#allocation6 + $0x58] sm:$0xff]
    %v168 = vld [vmem:[#allocation6 + $0x60] sm:$0xff]
    %v169 = vld [vmem:[#allocation6 + $0x68] sm:$0xff]
    %v170 = vld [vmem:[#allocation6 + $0x70] sm:$0xff]
    %v171 = vld [vmem:[#allocation6 + $0x78] sm:$0xff]
    %v172 = vld [vmem:[#allocation6 + $0x80] sm:$0xff]
    %v173 = vld [vmem:[#allocation6 + $0x88] sm:$0xff]
    %v174 = vld [vmem:[#allocation6 + $0x90] sm:$0xff]
    %v175 = vld [vmem:[#allocation6 + $0x98] sm:$0xff]
    %v176 = vld [vmem:[#allocation6 + $0xa0] sm:$0xff]
    %v177 = vld [vmem:[#allocation6 + $0xa8] sm:$0xff]
    %v178 = vld [vmem:[#allocation6 + $0xb0] sm:$0xff]
    %v179 = vld [vmem:[#allocation6 + $0xb8] sm:$0xff]
    %v180 = vld [vmem:[#allocation6 + $0xc0] sm:$0xff]
    %v181 = vld [vmem:[#allocation6 + $0xc8] sm:$0xff]
    %v182 = vld [vmem:[#allocation6 + $0xd0] sm:$0xff]
    %v183 = vld [vmem:[#allocation6 + $0xd8] sm:$0xff]
    %v184 = vld [vmem:[#allocation6 + $0xe0] sm:$0xff]
    %v185 = vld [vmem:[#allocation6 + $0xe8] sm:$0xff]
    %v186 = vld [vmem:[#allocation6 + $0xf0] sm:$0xff]
    %v187 = vld [vmem:[#allocation6 + $0xf8] sm:$0xff]
    %v188 = vld [vmem:[%s4] sm:$0x3]
    %v190 = vlaneseq
    %v191 = vshrl.u32 %v190, 7
    %v192 = vsub.s32 0, %v191
    %v193 = vrot.slane %v188, %v192
    %v194 = vlaneseq
    %v195 = vshrl.u32 %v194, 7
    %v196 = vsub.s32 1, %v195
    %v197 = vrot.slane %v188, %v196
    %v232 = vunpack.c.l.b16 %v156
    %v233 = vunpack.c.h.b16 %v156
    %v234 = vunpack.c.l.b16 %v157
    %v235 = vunpack.c.h.b16 %v157
    %v236 = vunpack.c.l.b16 %v158
    %v237 = vunpack.c.h.b16 %v158
    %v238 = vunpack.c.l.b16 %v159
    %v239 = vunpack.c.h.b16 %v159
    %v240 = vunpack.c.l.b16 %v160
    %v241 = vunpack.c.h.b16 %v160
    %v242 = vunpack.c.l.b16 %v161
    %v243 = vunpack.c.h.b16 %v161
    %v244 = vunpack.c.l.b16 %v162
    %v245 = vunpack.c.h.b16 %v162
    %v246 = vunpack.c.l.b16 %v163
    %v247 = vunpack.c.h.b16 %v163
    %v248 = vunpack.c.l.b16 %v164
    %v249 = vunpack.c.h.b16 %v164
    %v250 = vunpack.c.l.b16 %v165
    %v251 = vunpack.c.h.b16 %v165
    %v252 = vunpack.c.l.b16 %v166
    %v253 = vunpack.c.h.b16 %v166
    %v254 = vunpack.c.l.b16 %v167
    %v255 = vunpack.c.h.b16 %v167
    %v256 = vunpack.c.l.b16 %v168
    %v257 = vunpack.c.h.b16 %v168
    %v258 = vunpack.c.l.b16 %v169
    %v259 = vunpack.c.h.b16 %v169
    %v260 = vunpack.c.l.b16 %v170
    %v261 = vunpack.c.h.b16 %v170
    %v262 = vunpack.c.l.b16 %v171
    %v263 = vunpack.c.h.b16 %v171
    %v264 = vunpack.c.l.b16 %v172
    %v265 = vunpack.c.h.b16 %v172
    %v266 = vunpack.c.l.b16 %v173
    %v267 = vunpack.c.h.b16 %v173
    %v268 = vunpack.c.l.b16 %v174
    %v269 = vunpack.c.h.b16 %v174
    %v270 = vunpack.c.l.b16 %v175
    %v271 = vunpack.c.h.b16 %v175
    %v272 = vunpack.c.l.b16 %v176
    %v273 = vunpack.c.h.b16 %v176
    %v274 = vunpack.c.l.b16 %v177
    %v275 = vunpack.c.h.b16 %v177
    %v276 = vunpack.c.l.b16 %v178
    %v277 = vunpack.c.h.b16 %v178
    %v278 = vunpack.c.l.b16 %v179
    %v279 = vunpack.c.h.b16 %v179
    %v280 = vunpack.c.l.b16 %v180
    %v281 = vunpack.c.h.b16 %v180
    %v282 = vunpack.c.l.b16 %v181
    %v283 = vunpack.c.h.b16 %v181
    %v284 = vunpack.c.l.b16 %v182
    %v285 = vunpack.c.h.b16 %v182
    %v286 = vunpack.c.l.b16 %v183
    %v287 = vunpack.c.h.b16 %v183
    %v288 = vunpack.c.l.b16 %v184
    %v289 = vunpack.c.h.b16 %v184
    %v290 = vunpack.c.l.b16 %v185
    %v291 = vunpack.c.h.b16 %v185
    %v292 = vunpack.c.l.b16 %v186
    %v293 = vunpack.c.h.b16 %v186
    %v294 = vunpack.c.l.b16 %v187
    %v295 = vunpack.c.h.b16 %v187
    %v296 = vpack.c.b16 %v234, %v232
    %v297 = vpack.c.b16 %v235, %v233
    %v298 = vpack.c.b16 %v238, %v236
    %v299 = vpack.c.b16 %v239, %v237
    %v300 = vpack.c.b16 %v242, %v240
    %v301 = vpack.c.b16 %v243, %v241
    %v302 = vpack.c.b16 %v246, %v244
    %v303 = vpack.c.b16 %v247, %v245
    %v304 = vpack.c.b16 %v250, %v248
    %v305 = vpack.c.b16 %v251, %v249
    %v306 = vpack.c.b16 %v254, %v252
    %v307 = vpack.c.b16 %v255, %v253
    %v308 = vpack.c.b16 %v258, %v256
    %v309 = vpack.c.b16 %v259, %v257
    %v310 = vpack.c.b16 %v262, %v260
    %v311 = vpack.c.b16 %v263, %v261
    %v312 = vpack.c.b16 %v266, %v264
    %v313 = vpack.c.b16 %v267, %v265
    %v314 = vpack.c.b16 %v270, %v268
    %v315 = vpack.c.b16 %v271, %v269
    %v316 = vpack.c.b16 %v274, %v272
    %v317 = vpack.c.b16 %v275, %v273
    %v318 = vpack.c.b16 %v278, %v276
    %v319 = vpack.c.b16 %v279, %v277
    %v320 = vpack.c.b16 %v282, %v280
    %v321 = vpack.c.b16 %v283, %v281
    %v322 = vpack.c.b16 %v286, %v284
    %v323 = vpack.c.b16 %v287, %v285
    %v324 = vpack.c.b16 %v290, %v288
    %v325 = vpack.c.b16 %v291, %v289
    %v326 = vpack.c.b16 %v294, %v292
    %v327 = vpack.c.b16 %v295, %v293
    %360 = vmatprep.subr.bf16.mxu0 %v297
    %361 = vmatpush1.bf16.msra.mxu0 %v296
    %362 = vmatprep.subr.bf16.mxu0 %v299
    %363 = vmatpush1.bf16.msra.mxu0 %v298
    %364 = vmatprep.subr.bf16.mxu0 %v301
    %365 = vmatpush1.bf16.msra.mxu0 %v300
    %366 = vmatprep.subr.bf16.mxu0 %v303
    %367 = vmatpush1.bf16.msra.mxu0 %v302
    %368 = vmatprep.subr.bf16.mxu0 %v305
    %369 = vmatpush1.bf16.msra.mxu0 %v304
    %370 = vmatprep.subr.bf16.mxu0 %v307
    %371 = vmatpush1.bf16.msra.mxu0 %v306
    %372 = vmatprep.subr.bf16.mxu0 %v309
    %373 = vmatpush1.bf16.msra.mxu0 %v308
    %374 = vmatprep.subr.bf16.mxu0 %v311
    %375 = vmatpush1.bf16.msra.mxu0 %v310
    %376 = vmatprep.subr.bf16.mxu0 %v313
    %377 = vmatpush1.bf16.msra.mxu0 %v312
    %378 = vmatprep.subr.bf16.mxu0 %v315
    %379 = vmatpush1.bf16.msra.mxu0 %v314
    %380 = vmatprep.subr.bf16.mxu0 %v317
    %381 = vmatpush1.bf16.msra.mxu0 %v316
    %382 = vmatprep.subr.bf16.mxu0 %v319
    %383 = vmatpush1.bf16.msra.mxu0 %v318
    %384 = vmatprep.subr.bf16.mxu0 %v321
    %385 = vmatpush1.bf16.msra.mxu0 %v320
    %386 = vmatprep.subr.bf16.mxu0 %v323
    %387 = vmatpush1.bf16.msra.mxu0 %v322
    %388 = vmatprep.subr.bf16.mxu0 %v325
    %389 = vmatpush1.bf16.msra.mxu0 %v324
    %390 = vmatprep.subr.bf16.mxu0 %v327
    %391 = vmatpush1.bf16.msra.mxu0 %v326
    %392 = vmatprep.mubr.bf16.mxu0 %v155
    %393 = vmatmul.mubr.bf16.gmra.mrb[0].mxu0 %v154
    %v394 = vpop.f32.mrb[0].mxu0
    %v395 = vadd.f32 %v193, %v394
    %v396 = vpop.f32.mrb[0].mxu0
    %v397 = vadd.f32 %v197, %v396
    %v398 = vpop.f32.mrb[0].mxu0
    %v399 = vpop.f32.mrb[0].mxu0
    %400 = vdwg.mxu0
    %v401 = vpack.c.bf16 %v395, %v395
    %v402 = vpack.c.bf16 %v397, %v397
    %v403 = vtanh.bf16.pop %v401
    %v404 = vtanh.bf16.pop %v402
    %v405 = vld [vmem:[#allocation7] sm:$0xf]
    %v406 = vld [vmem:[#allocation7 + $0x4] sm:$0xf]
    %v407 = vld [vmem:[#allocation7 + $0x8] sm:$0xf]
    %v408 = vld [vmem:[#allocation7 + $0xc] sm:$0xf]
    %v409 = vld [vmem:[#allocation7 + $0x10] sm:$0xf]
    %v410 = vld [vmem:[#allocation7 + $0x14] sm:$0xf]
    %v411 = vld [vmem:[#allocation7 + $0x18] sm:$0xf]
    %v412 = vld [vmem:[#allocation7 + $0x1c] sm:$0xf]
    %v413 = vld [vmem:[#allocation7 + $0x20] sm:$0xf]
    %v414 = vld [vmem:[#allocation7 + $0x24] sm:$0xf]
    %v415 = vld [vmem:[#allocation7 + $0x28] sm:$0xf]
    %v416 = vld [vmem:[#allocation7 + $0x2c] sm:$0xf]
    %v417 = vld [vmem:[#allocation7 + $0x30] sm:$0xf]
    %v418 = vld [vmem:[#allocation7 + $0x34] sm:$0xf]
    %v419 = vld [vmem:[#allocation7 + $0x38] sm:$0xf]
    %v420 = vld [vmem:[#allocation7 + $0x3c] sm:$0xf]
    %v421 = vld [vmem:[#allocation7 + $0x40] sm:$0xf]
    %v422 = vld [vmem:[#allocation7 + $0x44] sm:$0xf]
    %v423 = vld [vmem:[#allocation7 + $0x48] sm:$0xf]
    %v424 = vld [vmem:[#allocation7 + $0x4c] sm:$0xf]
    %v425 = vld [vmem:[#allocation7 + $0x50] sm:$0xf]
    %v426 = vld [vmem:[#allocation7 + $0x54] sm:$0xf]
    %v427 = vld [vmem:[#allocation7 + $0x58] sm:$0xf]
    %v428 = vld [vmem:[#allocation7 + $0x5c] sm:$0xf]
    %v429 = vld [vmem:[#allocation7 + $0x60] sm:$0xf]
    %v430 = vld [vmem:[#allocation7 + $0x64] sm:$0xf]
    %v431 = vld [vmem:[#allocation7 + $0x68] sm:$0xf]
    %v432 = vld [vmem:[#allocation7 + $0x6c] sm:$0xf]
    %v433 = vld [vmem:[#allocation7 + $0x70] sm:$0xf]
    %v434 = vld [vmem:[#allocation7 + $0x74] sm:$0xf]
    %v435 = vld [vmem:[#allocation7 + $0x78] sm:$0xf]
    %v436 = vld [vmem:[#allocation7 + $0x7c] sm:$0xf]
    %v437 = vld [vmem:[%s6] sm:$0x1]
    %v439 = vlaneseq
    %v440 = vshrl.u32 %v439, 7
    %v441 = vsub.s32 0, %v440
    %v442 = vrot.slane %v437, %v441
    %v476 = vunpack.c.l.b16 %v405
    %v477 = vunpack.c.l.b16 %v406
    %v478 = vunpack.c.l.b16 %v407
    %v479 = vunpack.c.l.b16 %v408
    %v480 = vunpack.c.l.b16 %v409
    %v481 = vunpack.c.l.b16 %v410
    %v482 = vunpack.c.l.b16 %v411
    %v483 = vunpack.c.l.b16 %v412
    %v484 = vunpack.c.l.b16 %v413
    %v485 = vunpack.c.l.b16 %v414
    %v486 = vunpack.c.l.b16 %v415
    %v487 = vunpack.c.l.b16 %v416
    %v488 = vunpack.c.l.b16 %v417
    %v489 = vunpack.c.l.b16 %v418
    %v490 = vunpack.c.l.b16 %v419
    %v491 = vunpack.c.l.b16 %v420
    %v492 = vunpack.c.l.b16 %v421
    %v493 = vunpack.c.l.b16 %v422
    %v494 = vunpack.c.l.b16 %v423
    %v495 = vunpack.c.l.b16 %v424
    %v496 = vunpack.c.l.b16 %v425
    %v497 = vunpack.c.l.b16 %v426
    %v498 = vunpack.c.l.b16 %v427
    %v499 = vunpack.c.l.b16 %v428
    %v500 = vunpack.c.l.b16 %v429
    %v501 = vunpack.c.l.b16 %v430
    %v502 = vunpack.c.l.b16 %v431
    %v503 = vunpack.c.l.b16 %v432
    %v504 = vunpack.c.l.b16 %v433
    %v505 = vunpack.c.l.b16 %v434
    %v506 = vunpack.c.l.b16 %v435
    %v507 = vunpack.c.l.b16 %v436
    %v508 = vpack.c.b16 %v477, %v476
    %v509 = vpack.c.b16 %v479, %v478
    %v510 = vpack.c.b16 %v481, %v480
    %v511 = vpack.c.b16 %v483, %v482
    %v512 = vpack.c.b16 %v485, %v484
    %v513 = vpack.c.b16 %v487, %v486
    %v514 = vpack.c.b16 %v489, %v488
    %v515 = vpack.c.b16 %v491, %v490
    %v516 = vpack.c.b16 %v493, %v492
    %v517 = vpack.c.b16 %v495, %v494
    %v518 = vpack.c.b16 %v497, %v496
    %v519 = vpack.c.b16 %v499, %v498
    %v520 = vpack.c.b16 %v501, %v500
    %v521 = vpack.c.b16 %v503, %v502
    %v522 = vpack.c.b16 %v505, %v504
    %v523 = vpack.c.b16 %v507, %v506
    %540 = vmatprep.subr.bf16.mxu0 0
    %541 = vmatpush1.bf16.msra.mxu0 %v508
    %542 = vmatprep.subr.bf16.mxu0 0
    %543 = vmatpush1.bf16.msra.mxu0 %v509
    %544 = vmatprep.subr.bf16.mxu0 0
    %545 = vmatpush1.bf16.msra.mxu0 %v510
    %546 = vmatprep.subr.bf16.mxu0 0
    %547 = vmatpush1.bf16.msra.mxu0 %v511
    %548 = vmatprep.subr.bf16.mxu0 0
    %549 = vmatpush1.bf16.msra.mxu0 %v512
    %550 = vmatprep.subr.bf16.mxu0 0
    %551 = vmatpush1.bf16.msra.mxu0 %v513
    %552 = vmatprep.subr.bf16.mxu0 0
    %553 = vmatpush1.bf16.msra.mxu0 %v514
    %554 = vmatprep.subr.bf16.mxu0 0
    %555 = vmatpush1.bf16.msra.mxu0 %v515
    %556 = vmatprep.subr.bf16.mxu0 0
    %557 = vmatpush1.bf16.msra.mxu0 %v516
    %558 = vmatprep.subr.bf16.mxu0 0
    %559 = vmatpush1.bf16.msra.mxu0 %v517
    %560 = vmatprep.subr.bf16.mxu0 0
    %561 = vmatpush1.bf16.msra.mxu0 %v518
    %562 = vmatprep.subr.bf16.mxu0 0
    %563 = vmatpush1.bf16.msra.mxu0 %v519
    %564 = vmatprep.subr.bf16.mxu0 0
    %565 = vmatpush1.bf16.msra.mxu0 %v520
    %566 = vmatprep.subr.bf16.mxu0 0
    %567 = vmatpush1.bf16.msra.mxu0 %v521
    %568 = vmatprep.subr.bf16.mxu0 0
    %569 = vmatpush1.bf16.msra.mxu0 %v522
    %570 = vmatprep.subr.bf16.mxu0 0
    %571 = vmatpush1.bf16.msra.mxu0 %v523
    %572 = vmatprep.mubr.bf16.mxu0 %v404
    %573 = vmatmul.mubr.bf16.gmra.mrb[0].mxu0 %v403
    %v574 = vpop.f32.mrb[0].mxu0
    %v575 = vadd.f32 %v442, %v574
    %v576 = vpop.f32.mrb[0].mxu0
    %v577 = vpop.f32.mrb[0].mxu0
    %v578 = vpop.f32.mrb[0].mxu0
    %579 = vdwg.mxu0
    %vm580 = vcmask 31744
    %581 = vst.msk [vmem:[%s7] sm:$0xff] %vm580, %v575
    %v582 = vlaneseq
    %v583 = vand.u32 %v582, 127
    %vm584 = vcmp.eq.s32.totalorder %v583, 4
    %v585 = vsel %vm584, %v575, 0.0
    %586 = vadd.xlane.f32.xlu0 %v585
    %v587 = vpop.xlane.xlu0 %586
    %vm588 = vcmask 7168
    %589 = vst.msk [vmem:[%s8] sm:$0xff] %vm588, %v587
    // Predicated region
    $region46: #{tpu_custom_call.1} parent=1 // pred_check
      _
    $region47: #{tpu_custom_call.1} parent=1 // pred_check_branch
      %591 = sbr.rel (0) target = $region49
    $region48: #{tpu_custom_call.1} parent=1 // pred_region
      _
    $region49: #{tpu_custom_call.1} parent=1 // pred_fallthru
      _
    // Predicated region
    $region50: #{tpu_custom_call.1} parent=1 // pred_check
      _
    $region51: #{tpu_custom_call.1} parent=1 // pred_check_branch
      %593 = sbr.rel (0) target = $region53
    $region52: #{tpu_custom_call.1} parent=1 // pred_region
      _
    $region53: #{tpu_custom_call.1} parent=1 // pred_fallthru
      _
    // Predicated region
    $region54: #{tpu_custom_call.1} parent=1 // pred_check
      _
    $region55: #{tpu_custom_call.1} parent=1 // pred_check_branch
      %595 = sbr.rel (0) target = $region57
    $region56: #{tpu_custom_call.1} parent=1 // pred_region
      _
    $region57: #{tpu_custom_call.1} parent=1 // pred_fallthru
      _
    // Predicated region
    $region58: #{tpu_custom_call.1} parent=1 // pred_check
      _
    $region59: #{tpu_custom_call.1} parent=1 // pred_check_branch
      %597 = sbr.rel (0) target = $region61
    $region60: #{tpu_custom_call.1} parent=1 // pred_region
      _
    $region61: #{tpu_custom_call.1} parent=1 // pred_fallthru
      _
    %598 = vsyncpa [#allocation3], 1
    %599 = vsyncpa [#allocation5], 1
    %600 = vsyncpa [#allocation8], 1

</llo_original>
